<compile_context>
chip_gen: v6e
topology: v6e:2x2x1
jax: 0.10.0
libtpu: 0.0.40
codegen_flags: <defaults>
</compile_context>

<pallas_src>
import functools

import jax
import jax.numpy as jnp
from jax.experimental import pallas as pl
from jax.experimental.pallas import tpu as pltpu


_LANE = 128
_TARGET_TILE_BYTES = 4 * 1024 * 1024   # ~4 MiB of streamed x per reduction tile
_VMEM_BUDGET = 24 * 1024 * 1024        # tile-selection budget (double-buffered)
_VMEM_LIMIT = 32 * 1024 * 1024         # scoped-VMEM limit (safe on v5e/v6e/v7x)


def _default_num_cores():
    """TensorCores per chip that a "parallel" grid axis can shard across.

    v7x (and v4 / v5p) expose 2 TCs behind one device; v5e / v6e have 1.
    Falls back to 1 for anything unrecognized.
    """
    try:
        kind = jax.devices()[0].device_kind.lower()
    except Exception:
        return 1
    if any(tag in kind for tag in ("v7", "7x", "v4", "v5p")):
        return 2
    return 1


def _pick_tk(c, hw, itemsize, max_tk=None):
    """Largest lane-aligned reduction tile targeting ~4 MiB of x, VMEM-checked."""
    hw_pad = -(-hw // _LANE) * _LANE
    tk = _TARGET_TILE_BYTES // max(1, c * itemsize)
    tk = max(_LANE, (tk // _LANE) * _LANE)
    tk = min(tk, hw_pad)
    if max_tk is not None:
        tk = min(tk, max(_LANE, (int(max_tk) // _LANE) * _LANE))

    # Resident cost: double-buffered (C,C) f32 target gram + (C,C) f32 accumulator.
    fixed = 3 * c * c * 4
    if fixed + 2 * c * _LANE * itemsize > _VMEM_BUDGET:
        raise ValueError(
            f"StyleLoss Pallas kernel: C={c} resident gram blocks exceed the "
            f"{_VMEM_LIMIT >> 20} MiB scoped VMEM limit; split the gram rows.")
    while tk > _LANE and fixed + 2 * c * tk * itemsize > _VMEM_BUDGET:
        tk = max(_LANE, ((tk // 2) // _LANE) * _LANE)
    return int(tk)


def _flatten(x):
    """NCHW (N==1) -> (C, H*W). Free metadata reshape, no HBM copy."""
    _, c, h, w = x.shape
    return x.reshape(c, h * w)


def _masked_tile(x_ref, col0, hw, needs_mask, cast_bf16):
    """Load the (C, tk) tile, zero columns past hw, optionally cast to bf16."""
    xb = x_ref[...]
    if needs_mask:
        col = col0 + jax.lax.broadcasted_iota(jnp.int32, xb.shape, 1)
        xb = jnp.where(col < hw, xb, jnp.zeros_like(xb))
    if cast_bf16:
        xb = xb.astype(jnp.bfloat16)
    return xb


def _gram_kernel(x_ref, g_ref, acc_ref, *, norm, hw, tk, needs_mask):
    """Accumulate X @ X.T over the H*W grid axis; finalize normalized gram."""
    k = pl.program_id(0)

    @pl.when(k == 0)
    def _():
        acc_ref[...] = jnp.zeros_like(acc_ref)

    xb = _masked_tile(x_ref, k * tk, hw, needs_mask, cast_bf16=False)
    # Transposed-RHS contraction on the MXU (no explicit xb.T through the XLU).
    acc_ref[...] += jax.lax.dot_general(
        xb, xb, (((1,), (1,)), ((), ())), preferred_element_type=jnp.float32)

    @pl.when(k == pl.num_programs(0) - 1)
    def _():
        g_ref[...] = acc_ref[...] * norm


def _style_loss_fused_kernel(gt_ref, x_ref, loss_ref, acc_ref, *,
                             norm, hw, tk, needs_mask, cast_bf16):
    """Single-core path: stream x tiles, accumulate gram(x), finalize fused MSE.

    gt_ref  : (C, C)  precomputed, normalized target gram (resident block)
    x_ref   : (C, tk) streamed tile of flattened x
    loss_ref: (1, 1)  scalar output block (resident; written once on last step)
    acc_ref : (C, C)  f32 VMEM accumulator for gram(x)
    """
    k = pl.program_id(0)

    @pl.when(k == 0)
    def _():
        acc_ref[...] = jnp.zeros_like(acc_ref)

    xb = _masked_tile(x_ref, k * tk, hw, needs_mask, cast_bf16)
    acc_ref[...] += jax.lax.dot_general(
        xb, xb, (((1,), (1,)), ((), ())), preferred_element_type=jnp.float32)

    @pl.when(k == pl.num_programs(0) - 1)
    def _():
        diff = acc_ref[...] * norm - gt_ref[...]
        loss_ref[0, 0] = jnp.mean(diff * diff)


def _partial_gram_kernel(x_ref, pg_ref, acc_ref, *,
                         hw, tk, k_per_core, needs_mask, cast_bf16):
    """Megacore path: each "parallel" slice accumulates its own partial gram."""
    p = pl.program_id(0)
    k = pl.program_id(1)

    @pl.when(k == 0)
    def _():
        acc_ref[...] = jnp.zeros_like(acc_ref)

    col0 = (p * k_per_core + k) * tk
    xb = _masked_tile(x_ref, col0, hw, needs_mask, cast_bf16)
    acc_ref[...] += jax.lax.dot_general(
        xb, xb, (((1,), (1,)), ((), ())), preferred_element_type=jnp.float32)

    @pl.when(k == pl.num_programs(1) - 1)
    def _():
        pg_ref[0] = acc_ref[...]


def gram_matrix(x, *, max_tk=None):
    """Pallas equivalent of StyleLoss.gram_matrix for an NCHW (N==1) feature map."""
    b, c, h, w = x.shape
    assert b == 1, "gram_matrix's view(c, h*w) implies batch == 1"
    hw = h * w
    tk = _pick_tk(c, hw, jnp.dtype(x.dtype).itemsize, max_tk)
    x_flat = _flatten(x)
    num_k = -(-hw // tk)
    needs_mask = (num_k * tk != hw)
    norm = 1.0 / float(c * h * w)

    return pl.pallas_call(
        functools.partial(_gram_kernel, norm=norm, hw=hw, tk=tk,
                          needs_mask=needs_mask),
        out_shape=jax.ShapeDtypeStruct((c, c), jnp.float32),
        grid_spec=pltpu.PrefetchScalarGridSpec(
            num_scalar_prefetch=0,
            grid=(num_k,),
            in_specs=[pl.BlockSpec((c, tk), lambda k: (0, k))],
            out_specs=pl.BlockSpec((c, c), lambda k: (0, 0)),
            scratch_shapes=[pltpu.VMEM((c, c), jnp.float32)],
        ),
        compiler_params=pltpu.CompilerParams(
            dimension_semantics=("arbitrary",),   # reduction axis
            vmem_limit_bytes=_VMEM_LIMIT,
        ),
    )(x_flat)


def style_loss_forward(x, gram_target, *, num_cores=None, max_tk=None,
                       cast_operands_to_bf16=False):
    """Equivalent of StyleLoss.forward: returns (x, loss).

    gram_target: precomputed, normalized (C, C) gram of the fixed target feature
    map (compute once with gram_matrix(), mirroring __init__).
    num_cores:   None -> auto (2 on v7x/v4/v5p megacore parts, else 1).
    cast_operands_to_bf16: cast streamed f32 tiles to bf16 before the MXU dot
    (accumulation stays f32); useful when C is large on v5e.
    """
    b, c, h, w = x.shape
    assert b == 1, "gram_matrix's view(c, h*w) implies batch == 1"
    assert gram_target.shape == (c, c)

    hw = h * w
    tk = _pick_tk(c, hw, jnp.dtype(x.dtype).itemsize, max_tk)
    x_flat = _flatten(x)
    norm = 1.0 / float(c * h * w)
    num_k = -(-hw // tk)
    if num_cores is None:
        num_cores = _default_num_cores()
    cast_bf16 = bool(cast_operands_to_bf16) and x.dtype == jnp.float32

    if num_cores <= 1:
        # Fully fused: gram accumulation + MSE against the resident target gram.
        needs_mask = (num_k * tk != hw)
        loss = pl.pallas_call(
            functools.partial(_style_loss_fused_kernel, norm=norm, hw=hw, tk=tk,
                              needs_mask=needs_mask, cast_bf16=cast_bf16),
            out_shape=jax.ShapeDtypeStruct((1, 1), jnp.float32),
            grid_spec=pltpu.PrefetchScalarGridSpec(
                num_scalar_prefetch=0,
                grid=(num_k,),
                in_specs=[
                    pl.BlockSpec((c, c), lambda k: (0, 0)),    # resident target gram
                    pl.BlockSpec((c, tk), lambda k: (0, k)),   # streamed x tiles
                ],
                out_specs=pl.BlockSpec((1, 1), lambda k: (0, 0)),
                scratch_shapes=[pltpu.VMEM((c, c), jnp.float32)],
            ),
            compiler_params=pltpu.CompilerParams(
                dimension_semantics=("arbitrary",),   # reduction axis
                vmem_limit_bytes=_VMEM_LIMIT,
            ),
        )(gram_target.astype(jnp.float32), x_flat)
        return x, loss[0, 0]

    # Megacore path: split the H*W reduction over the TensorCores via a leading
    # "parallel" axis; each core writes its own partial gram, the (C*C)-element
    # sum + MSE epilogue is negligible and runs in XLA.
    k_per_core = -(-num_k // num_cores)
    needs_mask = (num_cores * k_per_core * tk != hw)

    def x_index_map(p, k):
        # Clamp so fully-out-of-range steps (odd split) re-read the last valid
        # block; the in-kernel column mask zeroes their contribution anyway.
        return (0, jnp.minimum(p * k_per_core + k, num_k - 1))

    partial = pl.pallas_call(
        functools.partial(_partial_gram_kernel, hw=hw, tk=tk,
                          k_per_core=k_per_core, needs_mask=needs_mask,
                          cast_bf16=cast_bf16),
        out_shape=jax.ShapeDtypeStruct((num_cores, c, c), jnp.float32),
        grid_spec=pltpu.PrefetchScalarGridSpec(
            num_scalar_prefetch=0,
            grid=(num_cores, k_per_core),
            in_specs=[pl.BlockSpec((c, tk), x_index_map)],
            out_specs=pl.BlockSpec((1, c, c), lambda p, k: (p, 0, 0)),
            scratch_shapes=[pltpu.VMEM((c, c), jnp.float32)],
        ),
        compiler_params=pltpu.CompilerParams(
            dimension_semantics=("parallel", "arbitrary"),
            vmem_limit_bytes=_VMEM_LIMIT,
        ),
    )(x_flat)

    gram_x = jnp.sum(partial, axis=0) * norm                 # (C, C) epilogue
    diff = gram_x - gram_target.astype(jnp.float32)
    loss = jnp.mean(diff * diff)
    return x, loss


def _reference_loss(x, target):
    """Pure-JAX reference matching the PyTorch module."""
    _, c, h, w = x.shape

    def gram(a):
        a = a.reshape(c, h * w).astype(jnp.float32)
        return (a @ a.T) / (c * h * w)

    gx, gt = gram(x), gram(target)
    return jnp.mean((gx - gt) ** 2)


if __name__ == "__main__":
    key = jax.random.PRNGKey(0)
    kx, kt, kx2, kt2 = jax.random.split(key, 4)

    # Case 1: lane-aligned spatial size; single-core fused-MSE path.
    x = jax.random.normal(kx, (1, 8, 16, 16), dtype=jnp.float32)
    target = jax.random.normal(kt, (1, 8, 16, 16), dtype=jnp.float32)
    gt = gram_matrix(target)                     # precomputed once, as in __init__
    out, loss = style_loss_forward(x, gt, num_cores=1)
    out, loss = jax.block_until_ready((out, loss))
    assert jnp.array_equal(out, x)               # forward returns x unchanged
    ref = _reference_loss(x, target)
    assert jnp.allclose(loss, ref, rtol=1e-4, atol=1e-6), (loss, ref)

    # Case 2: H*W not a multiple of 128 (in-kernel tail masking, no jnp.pad),
    # a forced small tile (multi-step gram accumulation) and the 2-core split
    # path (runs serially but correctly on 1-TC chips).
    x2 = jax.random.normal(kx2, (1, 12, 17, 19), dtype=jnp.float32)
    t2 = jax.random.normal(kt2, (1, 12, 17, 19), dtype=jnp.float32)
    gt2 = gram_matrix(t2)
    out2, loss2 = style_loss_forward(x2, gt2, num_cores=2, max_tk=128)
    out2, loss2 = jax.block_until_ready((out2, loss2))
    assert jnp.array_equal(out2, x2)
    ref2 = _reference_loss(x2, t2)
    assert jnp.allclose(loss2, ref2, rtol=1e-4, atol=1e-6), (loss2, ref2)

    # Case 3: auto core count + in-kernel bf16 operand cast (looser tolerance).
    out3, loss3 = style_loss_forward(x, gt, cast_operands_to_bf16=True)
    out3, loss3 = jax.block_until_ready((out3, loss3))
    assert jnp.array_equal(out3, x)
    assert jnp.allclose(loss3, ref, rtol=5e-2, atol=1e-5), (loss3, ref)

    print("KERNEL_OK")
</pallas_src>

<mosaic_0001>
module attributes {stable_mosaic.version = 11 : i64} {
  func.func @_gram_kernel(%arg0: i32, %arg1: memref<8x256xf32, #tpu.memory_space<vmem>>, %arg2: memref<8x8xf32, #tpu.memory_space<vmem>>, %arg3: memref<8x8xf32, #tpu.memory_space<vmem>>) attributes {dimension_semantics = [#tpu.dimension_semantics<arbitrary>], iteration_bounds = array<i64: 1>, scalar_prefetch = 0 : i64, scratch_operands = 1 : i64, tpu.core_type = #tpu.core_type<tc>, window_params = [{transform_indices = @transform_0, window_bounds = array<i64: 8, 256>}, {pipeline_mode = #tpu.pipeline_mode<synchronous>, transform_indices = @transform_1, window_bounds = array<i64: 8, 8>}]} {
    %c0_i32 = arith.constant 0 : i32
    %0 = arith.cmpi eq, %arg0, %c0_i32 : i32
    %1 = arith.extui %0 : i1 to i32
    %c0_i32_0 = arith.constant 0 : i32
    %2 = arith.cmpi ne, %1, %c0_i32_0 : i32
    scf.if %2 {
      %cst_8 = arith.constant 0.000000e+00 : f32
      %11 = vector.broadcast %cst_8 : f32 to vector<8x8xf32>
      %c0_9 = arith.constant 0 : index
      %c0_10 = arith.constant 0 : index
      %12 = vector.load %arg3[%c0_9, %c0_10] : memref<8x8xf32, #tpu.memory_space<vmem>>, vector<8x8xf32>
      tpu.vector_store %arg3[%c0_9, %c0_10], %11 {strides = array<i32>} : memref<8x8xf32, #tpu.memory_space<vmem>>, vector<8x8xf32>,
    } else {
    }
    %c0 = arith.constant 0 : index
    %c0_1 = arith.constant 0 : index
    %3 = vector.load %arg1[%c0, %c0_1] : memref<8x256xf32, #tpu.memory_space<vmem>>, vector<8x256xf32>
    %c0_2 = arith.constant 0 : index
    %c0_3 = arith.constant 0 : index
    %4 = vector.load %arg3[%c0_2, %c0_3] : memref<8x8xf32, #tpu.memory_space<vmem>>, vector<8x8xf32>
    %cst = arith.constant dense<0.000000e+00> : vector<8x8xf32>
    %5 = tpu.matmul %3, %3, %cst {dimension_numbers = #tpu.dot_dimension_numbers<[1], [1], [0], [0], [0, 0, 1, 0], [], []>} : vector<8x256xf32>, vector<8x256xf32>, vector<8x8xf32> -> vector<8x8xf32>
    %6 = arith.addf %4, %5 : vector<8x8xf32>
    %c0_4 = arith.constant 0 : index
    %c0_5 = arith.constant 0 : index
    %7 = vector.load %arg3[%c0_4, %c0_5] : memref<8x8xf32, #tpu.memory_space<vmem>>, vector<8x8xf32>
    tpu.vector_store %arg3[%c0_4, %c0_5], %6 {strides = array<i32>} : memref<8x8xf32, #tpu.memory_space<vmem>>, vector<8x8xf32>,
    %c0_i32_6 = arith.constant 0 : i32
    %8 = arith.cmpi eq, %arg0, %c0_i32_6 : i32
    %9 = arith.extui %8 : i1 to i32
    %c0_i32_7 = arith.constant 0 : i32
    %10 = arith.cmpi ne, %9, %c0_i32_7 : i32
    scf.if %10 {
      %c0_8 = arith.constant 0 : index
      %c0_9 = arith.constant 0 : index
      %11 = vector.load %arg3[%c0_8, %c0_9] : memref<8x8xf32, #tpu.memory_space<vmem>>, vector<8x8xf32>
      %cst_10 = arith.constant 4.8828125E-4 : f32
      %12 = vector.broadcast %cst_10 : f32 to vector<8x8xf32>
      %13 = arith.mulf %11, %12 : vector<8x8xf32>
      %c0_11 = arith.constant 0 : index
      %c0_12 = arith.constant 0 : index
      %14 = vector.load %arg2[%c0_11, %c0_12] : memref<8x8xf32, #tpu.memory_space<vmem>>, vector<8x8xf32>
      tpu.vector_store %arg2[%c0_11, %c0_12], %13 {strides = array<i32>} : memref<8x8xf32, #tpu.memory_space<vmem>>, vector<8x8xf32>,
    } else {
    }
    return
  }
  func.func @transform_0(%arg0: i32) -> (i32, i32) {
    %c0_i32 = arith.constant 0 : i32
    %c0_i32_0 = arith.constant 0 : i32
    return %c0_i32, %arg0 : i32, i32
  }
  func.func @transform_1(%arg0: i32) -> (i32, i32) {
    %c0_i32 = arith.constant 0 : i32
    %c0_i32_0 = arith.constant 0 : i32
    %c0_i32_1 = arith.constant 0 : i32
    return %c0_i32, %c0_i32_0 : i32, i32
  }
}

</mosaic_0001>

<llo_original>
// kernel: tpu_custom_call.1
$region0: #{tpu_custom_call.1}
  #allocation0 [shape = 'u32[]', space=smem, size = 0x4, offset = 0x4, fixed_abs, tag = 'smem constant byte address 0x4 - core index']
  #allocation1 [shape = 'u32[144,128]{1,0:T(1,128)}', space=vmem, size = 0x12000, scoped, tag = 'internal scratch']
  #allocation2 [shape = 'f32[8,8]{1,0:T(8,128)}', space=vmem, size = 0x1000, scoped, tag = 'scratch operand']
  %s0 = inlined_call_operand.hbm [shape: f32[8,256], index: 0, kind: input, shape index: {}]
  %s1 = inlined_call_operand.hbm [shape: f32[8,8], index: 1, kind: output, shape index: {}]
  %s2 = sld [smem:[#allocation0]]
  $region26: #{tpu_custom_call.1} parent=0
    _
  %s4 = ssub.s32 1, %s2
  %s5 = scalar_select 0, %s4, %s2
  $region1: #{tpu_custom_call.1} parent=0
    #allocation3 [shape = 'u8[8192]{0}', space=vmem, size = 0x2000, scoped, tag = 'input window, operand 0, single buffered']
    #allocation4 [shape = 's32[1]{0}', space=sflag, size = 0x4, scoped, tag = 'scoped memory for tpu_custom_call.1']
    #allocation5 [shape = 's32[1]{0}', space=sflag, size = 0x4, scoped, tag = 'scoped memory for tpu_custom_call.1']
    #allocation6 [shape = 'u8[4096]{0}', space=vmem, size = 0x1000, scoped, tag = 'output window, operand 0, single buffered']
    %6 = vsyncpa [#allocation4], 0
    %7 = vsyncpa [#allocation5], 0
    // Predicated region
    $region2: #{tpu_custom_call.1} parent=1 // pred_check
      _
    $region3: #{tpu_custom_call.1} parent=1 // pred_check_branch
      %9 = sbr.rel (0) target = $region5
    $region4: #{tpu_custom_call.1} parent=1 // pred_region
      %s11 = ssub.s32 256, 256
      %12 = vsyncadd [#allocation4], %s11
      %s14 = sshll.u32 [#allocation3], 4
      %s15 = int_to_ptr.vmem [resolvable:$true] %s14
      %17 = dma.hbm_to_vmem [thread:$0]  %s0, 256, %s15, [#allocation4]
    $region5: #{tpu_custom_call.1} parent=1 // pred_fallthru
      _
    // Predicated region
    $region6: #{tpu_custom_call.1} parent=1 // pred_check
      _
    $region7: #{tpu_custom_call.1} parent=1 // pred_check_branch
      %19 = sbr.rel (0) target = $region9
    $region8: #{tpu_custom_call.1} parent=1 // pred_region
      %20 = dma.done [#allocation4], 256
    $region9: #{tpu_custom_call.1} parent=1 // pred_fallthru
      _
    %p21 = scmp.eq.s32.totalorder 0, 0
    // Predicated region
    $region10: #{tpu_custom_call.1} parent=1 // pred_check
      %p22 = pneg %p21
    $region11: #{tpu_custom_call.1} parent=1 // pred_check_branch
      %24 = sbr.rel (%p22) target = $region13
    $region12: #{tpu_custom_call.1} parent=1 // pred_region
      %vm25 = vcmask 64512
      %26 = vst.msk [vmem:[#allocation2] sm:$0xff] %vm25, 0.0
    $region13: #{tpu_custom_call.1} parent=1 // pred_fallthru
      _
    %v27 = vld [vmem:[#allocation3] sm:$0xff]
    %v28 = vld [vmem:[#allocation3 + $0x8] sm:$0xff]
    %v29 = vld [vmem:[#allocation2] sm:$0xff]
    %30 = vmatprep.subr.mxu0 0.0
    %31 = vmatpush1.xpose.msra.mxu0 0.0
    %32 = vmatprep.subr.mxu0 0.0
    %33 = vmatpush1.xpose.msra.mxu0 0.0
    %34 = vmatprep.subr.mxu0 0.0
    %35 = vmatpush1.xpose.msra.mxu0 0.0
    %36 = vmatprep.subr.mxu0 0.0
    %37 = vmatpush1.xpose.msra.mxu0 0.0
    %38 = vmatprep.subr.mxu0 0.0
    %39 = vmatpush1.xpose.msra.mxu0 0.0
    %40 = vmatprep.subr.mxu0 0.0
    %41 = vmatpush1.xpose.msra.mxu0 0.0
    %42 = vmatprep.subr.mxu0 0.0
    %43 = vmatpush1.xpose.msra.mxu0 0.0
    %44 = vmatprep.subr.mxu0 0.0
    %45 = vmatpush1.xpose.msra.mxu0 0.0
    %46 = vmatprep.subr.mxu0 0.0
    %47 = vmatpush1.xpose.msra.mxu0 0.0
    %48 = vmatprep.subr.mxu0 0.0
    %49 = vmatpush1.xpose.msra.mxu0 0.0
    %50 = vmatprep.subr.mxu0 0.0
    %51 = vmatpush1.xpose.msra.mxu0 0.0
    %52 = vmatprep.subr.mxu0 0.0
    %53 = vmatpush1.xpose.msra.mxu0 0.0
    %54 = vmatprep.subr.mxu0 0.0
    %55 = vmatpush1.xpose.msra.mxu0 0.0
    %56 = vmatprep.subr.mxu0 0.0
    %57 = vmatpush1.xpose.msra.mxu0 0.0
    %58 = vmatprep.subr.mxu0 0.0
    %59 = vmatpush1.xpose.msra.mxu0 0.0
    %60 = vmatprep.subr.mxu0 %v28
    %61 = vmatpush1.xpose.msra.mxu0 %v27
    %62 = vmatprep.subr.mxu0 0.0
    %63 = vmatpush2.xpose.msra.mxu0 0.0
    %64 = vmatprep.subr.mxu0 0.0
    %65 = vmatpush2.xpose.msra.mxu0 0.0
    %66 = vmatprep.subr.mxu0 0.0
    %67 = vmatpush2.xpose.msra.mxu0 0.0
    %68 = vmatprep.subr.mxu0 0.0
    %69 = vmatpush2.xpose.msra.mxu0 0.0
    %70 = vmatprep.subr.mxu0 0.0
    %71 = vmatpush2.xpose.msra.mxu0 0.0
    %72 = vmatprep.subr.mxu0 0.0
    %73 = vmatpush2.xpose.msra.mxu0 0.0
    %74 = vmatprep.subr.mxu0 0.0
    %75 = vmatpush2.xpose.msra.mxu0 0.0
    %76 = vmatprep.subr.mxu0 0.0
    %77 = vmatpush2.xpose.msra.mxu0 0.0
    %78 = vmatprep.subr.mxu0 0.0
    %79 = vmatpush2.xpose.msra.mxu0 0.0
    %80 = vmatprep.subr.mxu0 0.0
    %81 = vmatpush2.xpose.msra.mxu0 0.0
    %82 = vmatprep.subr.mxu0 0.0
    %83 = vmatpush2.xpose.msra.mxu0 0.0
    %84 = vmatprep.subr.mxu0 0.0
    %85 = vmatpush2.xpose.msra.mxu0 0.0
    %86 = vmatprep.subr.mxu0 0.0
    %87 = vmatpush2.xpose.msra.mxu0 0.0
    %88 = vmatprep.subr.mxu0 0.0
    %89 = vmatpush2.xpose.msra.mxu0 0.0
    %90 = vmatprep.subr.mxu0 0.0
    %91 = vmatpush2.xpose.msra.mxu0 0.0
    %92 = vmatprep.subr.mxu0 0.0
    %93 = vmatpush2.xpose.msra.mxu0 0.0
    %94 = vmatprep.mubr.f32.mxu0 %v28
    %95 = vmatmul.mubr.f32.gmra.mxu0 %v27
    %v96 = vpop.f32.mrf.mxu0
    %v97 = vadd.f32 0.0, %v96
    %v98 = vpop.f32.mrf.mxu0
    %99 = vdwg.mxu0
    %v100 = vadd.f32 %v29, %v97
    %vm101 = vcmask 64512
    %102 = vst.msk [vmem:[#allocation2] sm:$0xff] %vm101, %v100
    // Predicated region
    $region14: #{tpu_custom_call.1} parent=1 // pred_check
      %p103 = pneg %p21
    $region15: #{tpu_custom_call.1} parent=1 // pred_check_branch
      %105 = sbr.rel (%p103) target = $region17
    $region16: #{tpu_custom_call.1} parent=1 // pred_region
      %v106 = vld [vmem:[#allocation2] sm:$0xff]
      %v107 = vmul.f32 %v106, 0.00048828125
      %108 = vst.msk [vmem:[#allocation6] sm:$0xff] %vm101, %v107
    $region17: #{tpu_custom_call.1} parent=1 // pred_fallthru
      _
    // Predicated region
    $region18: #{tpu_custom_call.1} parent=1 // pred_check
      _
    $region19: #{tpu_custom_call.1} parent=1 // pred_check_branch
      %110 = sbr.rel (0) target = $region21
    $region20: #{tpu_custom_call.1} parent=1 // pred_region
      %s112 = ssub.s32 128, 128
      %113 = vsyncadd [#allocation5], %s112
      %s115 = sshll.u32 [#allocation6], 4
      %s116 = int_to_ptr.vmem [resolvable:$true] %s115
      %118 = dma.vmem_to_hbm [thread:$0]  %s116, 128, %s1, [#allocation5]
    $region21: #{tpu_custom_call.1} parent=1 // pred_fallthru
      _
    // Predicated region
    $region22: #{tpu_custom_call.1} parent=1 // pred_check
      _
    $region23: #{tpu_custom_call.1} parent=1 // pred_check_branch
      %120 = sbr.rel (0) target = $region25
    $region24: #{tpu_custom_call.1} parent=1 // pred_region
      %121 = dma.done [#allocation5], 128
    $region25: #{tpu_custom_call.1} parent=1 // pred_fallthru
      _
    %122 = vsyncpa [#allocation4], 1
    %123 = vsyncpa [#allocation5], 1

</llo_original>
